<compile_context>
chip_gen: v6e
topology: v6e:2x2x1
jax: 0.10.0
libtpu: 0.0.40
codegen_flags: <defaults>
</compile_context>

<pallas_src>
import jax
import jax.numpy as jnp
from jax import lax
from jax.experimental import pallas as pl
from jax.experimental.pallas import tpu as pltpu

NEG_SLOPE = 0.01   # nn.LeakyReLU default
LN_EPS = 1e-5      # nn.LayerNorm default


def dqn_kernel(x_ref, w1_ref, b1_ref, w2_ref, b2_ref, out_ref):
    """One batch-tile of the DQN forward pass, fully fused in VMEM.

    x_ref is f32 (cast to bf16 here, under the DMA). w1/w2 are bf16 (MXU-native),
    biases and LayerNorm statistics are f32. gamma/beta are pre-folded into w2/b2.
    out_ref is a lane-dense (A+2, tile_b) f32 slab: [q^T ; best_value ; best_index].
    """
    # Linear 1 (MXU, bf16 in, f32 accumulate); in-kernel bf16 cast of x is free under the DMA.
    x = x_ref[...].astype(w1_ref.dtype)
    h = jnp.dot(x, w1_ref[...], preferred_element_type=jnp.float32) + b1_ref[...]

    # LeakyReLU (VPU, f32)
    h = jnp.where(h > 0, h, NEG_SLOPE * h)

    # LayerNorm over the feature (lane) axis, f32 statistics (affine folded into w2/b2)
    mean = jnp.mean(h, axis=-1, keepdims=True)
    cent = h - mean
    var = jnp.mean(cent * cent, axis=-1, keepdims=True)
    h = cent * lax.rsqrt(var + LN_EPS)

    # Linear 2 (MXU, bf16 in, f32 accumulate) with folded LN affine
    q = jnp.dot(h.astype(w2_ref.dtype), w2_ref[...],
                preferred_element_type=jnp.float32) + b2_ref[...]          # (tile_b, A)

    # Transpose the small q slab (XLU, off the store path) so every store is lane-dense.
    q_t = q.T                                                              # (A, tile_b)

    # Fused get_best_choice: max + first-argmax over the tiny action (sublane) axis.
    q_max = jnp.max(q_t, axis=0, keepdims=True)                            # (1, tile_b)
    row_ids = lax.broadcasted_iota(jnp.int32, q_t.shape, 0)
    big = jnp.int32(2 ** 30)
    idx = jnp.min(jnp.where(q_t == q_max, row_ids, big),
                  axis=0, keepdims=True)                                   # (1, tile_b)

    # Single unmasked store of the packed (A+2, tile_b) slab.
    out_ref[...] = jnp.concatenate(
        [q_t, q_max, idx.astype(jnp.float32)], axis=0)


def _auto_tile_b(B, max_tile=8192, min_tile=128):
    """Batch tile: multiple of 128 (lane-dense packed output), large enough to amortize the
    ~0.35us/grid-step overhead, with an even tile count so v7x's dual TCs stay balanced."""
    if B <= min_tile:
        return min_tile
    n_tiles = max(2, pl.cdiv(B, max_tile))
    if n_tiles % 2:
        n_tiles += 1
    tile = min_tile * pl.cdiv(pl.cdiv(B, n_tiles), min_tile)
    return int(min(max(tile, min_tile), max_tile))


def dqn_forward(x, params, *, tile_b=None, compute_dtype=jnp.bfloat16):
    """DeepQNetwork forward (+ fused get_best_choice) via a single Pallas kernel.

    x: (B, n_states) float array.
    params: dict with w1 (S,H), b1 (1,H), gamma (1,H), beta (1,H), w2 (H,A), b2 (1,A).
    Returns (q_values (B,A) f32, best_idx (B,) int32, best_val (B,) f32).
    """
    B, S = x.shape
    H = params["w1"].shape[1]
    A = params["w2"].shape[1]

    # ---- Host-side parameter prep (f32), then cast matmul operands to bf16 ----
    gamma = params["gamma"].astype(jnp.float32).reshape(H, 1)
    beta = params["beta"].astype(jnp.float32).reshape(1, H)
    w2_f32 = params["w2"].astype(jnp.float32)
    w2_folded = gamma * w2_f32                                   # diag(gamma) @ w2
    b2_folded = beta @ w2_f32 + params["b2"].astype(jnp.float32).reshape(1, A)

    w1 = params["w1"].astype(compute_dtype)
    w2 = w2_folded.astype(compute_dtype)
    b1 = params["b1"].astype(jnp.float32).reshape(1, H)
    b2 = b2_folded.astype(jnp.float32)

    # ---- Batch tiling; ragged tail handled by Pallas block masking (no host-side pad) ----
    if tile_b is None:
        tile_b = _auto_tile_b(B)
    assert tile_b % 128 == 0, "tile_b must be a multiple of 128 (lane-dense packed output)"
    n_tiles = pl.cdiv(B, tile_b)

    R = A + 2  # packed output rows: q^T (A), best value (1), best index (1)

    elt = 2  # bf16 bytes for the weights
    cost = pl.CostEstimate(
        flops=2 * B * (S * H + H * A),
        transcendentals=B,  # rsqrt per row
        bytes_accessed=(B * S * 4          # x read (f32, cast in-kernel)
                        + R * B * 4        # packed output write
                        + (S * H + H * A) * elt + (H + A) * 4),
    )

    packed = pl.pallas_call(
        dqn_kernel,
        out_shape=jax.ShapeDtypeStruct((R, B), jnp.float32),
        grid_spec=pltpu.PrefetchScalarGridSpec(
            num_scalar_prefetch=0,
            grid=(n_tiles,),
            in_specs=[
                pl.BlockSpec((tile_b, S), lambda i: (i, 0)),   # x tile (f32)
                pl.BlockSpec((S, H), lambda i: (0, 0)),        # w1 (bf16), VMEM-resident
                pl.BlockSpec((1, H), lambda i: (0, 0)),        # b1 (f32)
                pl.BlockSpec((H, A), lambda i: (0, 0)),        # w2 folded (bf16)
                pl.BlockSpec((1, A), lambda i: (0, 0)),        # b2 folded (f32)
            ],
            out_specs=pl.BlockSpec((R, tile_b), lambda i: (0, i)),  # lane-dense packed slab
        ),
        compiler_params=pltpu.CompilerParams(
            dimension_semantics=("parallel",),
            vmem_limit_bytes=32 * 1024 * 1024,
        ),
        cost_estimate=cost,
    )(x.astype(jnp.float32), w1, b1, w2, b2)

    # Host-side unpack (layout plumbing on tiny arrays, not compute hoisting).
    q = jnp.transpose(packed[:A, :])             # (B, A) f32
    best_val = packed[A, :]                      # (B,)  f32
    best_idx = packed[A + 1, :].astype(jnp.int32)  # (B,) int32 (values are small exact ints)
    return q, best_idx, best_val


def init_params(key, n_states, n_actions, hidden):
    """Deterministic init mimicking PyTorch Linear default (uniform +/- 1/sqrt(fan_in))."""
    k1, k2, k3, k4 = jax.random.split(key, 4)
    lim1 = 1.0 / jnp.sqrt(jnp.float32(n_states))
    lim2 = 1.0 / jnp.sqrt(jnp.float32(hidden))
    return {
        "w1": jax.random.uniform(k1, (n_states, hidden), jnp.float32, -lim1, lim1),
        "b1": jax.random.uniform(k2, (1, hidden), jnp.float32, -lim1, lim1),
        "gamma": jnp.ones((1, hidden), jnp.float32),   # LayerNorm weight default
        "beta": jnp.zeros((1, hidden), jnp.float32),   # LayerNorm bias default
        "w2": jax.random.uniform(k3, (hidden, n_actions), jnp.float32, -lim2, lim2),
        "b2": jax.random.uniform(k4, (1, n_actions), jnp.float32, -lim2, lim2),
    }


def dqn_ref(x, p):
    """Pure-JAX f32 reference (matches the PyTorch module)."""
    h = x @ p["w1"] + p["b1"]
    h = jnp.where(h > 0, h, NEG_SLOPE * h)
    mean = jnp.mean(h, axis=-1, keepdims=True)
    var = jnp.mean((h - mean) ** 2, axis=-1, keepdims=True)
    h = (h - mean) * lax.rsqrt(var + LN_EPS)
    h = h * p["gamma"] + p["beta"]
    return h @ p["w2"] + p["b2"]


def _check(x, params, tile_b=None):
    B, A = x.shape[0], params["w2"].shape[1]
    q, best_idx, best_val = dqn_forward(x, params, tile_b=tile_b)
    q, best_idx, best_val = jax.block_until_ready((q, best_idx, best_val))
    ref = dqn_ref(x, params)
    assert q.shape == (B, A)
    assert best_idx.shape == (B,) and best_val.shape == (B,)
    # bf16 matmul operands -> relaxed tolerance vs f32 reference.
    assert jnp.allclose(q, ref, atol=5e-2, rtol=5e-2), "Q-value mismatch vs reference"
    # Fused get_best_choice must be exactly consistent with the kernel's own Q values.
    assert jnp.array_equal(best_val, jnp.max(q, axis=1)), "best_val mismatch"
    assert jnp.array_equal(best_idx, jnp.argmax(q, axis=1).astype(jnp.int32)), "best_idx mismatch"


if __name__ == "__main__":
    N_STATES, HIDDEN, N_ACTIONS = 16, 64, 4

    key = jax.random.PRNGKey(0)
    kx, kp, kg, kb, kx2 = jax.random.split(key, 5)
    params = init_params(kp, N_STATES, N_ACTIONS, HIDDEN)
    # Non-trivial LayerNorm affine so the host-side gamma/beta fold is actually tested.
    params["gamma"] = 1.0 + 0.1 * jax.random.normal(kg, (1, HIDDEN), jnp.float32)
    params["beta"] = 0.1 * jax.random.normal(kb, (1, HIDDEN), jnp.float32)

    # B=10: single partial block (exercises the Pallas block-masking ragged path).
    x_small = jax.random.normal(kx, (10, N_STATES), jnp.float32)
    _check(x_small, params)

    # B=300 with tile_b=128: multi-tile grid + partial last tile.
    x_multi = jax.random.normal(kx2, (300, N_STATES), jnp.float32)
    _check(x_multi, params, tile_b=128)

    print("KERNEL_OK")
</pallas_src>

<mosaic_0001>
module attributes {stable_mosaic.version = 11 : i64} {
  func.func @dqn_kernel(%arg0: i32, %arg1: memref<128x16xf32, #tpu.memory_space<vmem>>, %arg2: memref<16x64xbf16, #tpu.memory_space<vmem>>, %arg3: memref<1x64xf32, #tpu.memory_space<vmem>>, %arg4: memref<64x4xbf16, #tpu.memory_space<vmem>>, %arg5: memref<1x4xf32, #tpu.memory_space<vmem>>, %arg6: memref<6x128xf32, #tpu.memory_space<vmem>>) attributes {dimension_semantics = [#tpu.dimension_semantics<parallel>], iteration_bounds = array<i64: 1>, scalar_prefetch = 0 : i64, scratch_operands = 0 : i64, tpu.core_type = #tpu.core_type<tc>, window_params = [{transform_indices = @transform_0, window_bounds = array<i64: 128, 16>}, {pipeline_mode = #tpu.pipeline_mode<synchronous>, transform_indices = @transform_1, window_bounds = array<i64: 16, 64>}, {pipeline_mode = #tpu.pipeline_mode<synchronous>, transform_indices = @transform_2, window_bounds = array<i64: 1, 64>}, {pipeline_mode = #tpu.pipeline_mode<synchronous>, transform_indices = @transform_3, window_bounds = array<i64: 64, 4>}, {pipeline_mode = #tpu.pipeline_mode<synchronous>, transform_indices = @transform_4, window_bounds = array<i64: 1, 4>}, {transform_indices = @transform_5, window_bounds = array<i64: 6, 128>}]} {
    %c0 = arith.constant 0 : index
    %c0_0 = arith.constant 0 : index
    %0 = vector.load %arg1[%c0, %c0_0] : memref<128x16xf32, #tpu.memory_space<vmem>>, vector<128x16xf32>
    %1 = arith.truncf %0 : vector<128x16xf32> to vector<128x16xbf16>
    %c0_1 = arith.constant 0 : index
    %c0_2 = arith.constant 0 : index
    %2 = vector.load %arg2[%c0_1, %c0_2] : memref<16x64xbf16, #tpu.memory_space<vmem>>, vector<16x64xbf16>
    %cst = arith.constant dense<0.000000e+00> : vector<128x64xf32>
    %3 = tpu.matmul %1, %2, %cst {dimension_numbers = #tpu.dot_dimension_numbers<[1], [0], [0], [1], [0, 0, 1, 1], [], []>} : vector<128x16xbf16>, vector<16x64xbf16>, vector<128x64xf32> -> vector<128x64xf32>
    %c0_3 = arith.constant 0 : index
    %c0_4 = arith.constant 0 : index
    %4 = vector.load %arg3[%c0_3, %c0_4] : memref<1x64xf32, #tpu.memory_space<vmem>>, vector<1x64xf32>
    %5 = vector.broadcast %4 : vector<1x64xf32> to vector<128x64xf32>
    %6 = arith.addf %3, %5 : vector<128x64xf32>
    %cst_5 = arith.constant 0.000000e+00 : f32
    %7 = vector.broadcast %cst_5 : f32 to vector<128x64xf32>
    %8 = arith.cmpf ogt, %6, %7 : vector<128x64xf32>
    %cst_6 = arith.constant 0.00999999977 : f32
    %9 = vector.broadcast %cst_6 : f32 to vector<128x64xf32>
    %10 = arith.mulf %9, %6 : vector<128x64xf32>
    %11 = arith.select %8, %6, %10 : vector<128x64xi1>, vector<128x64xf32>
    %cst_7 = arith.constant dense<0.000000e+00> : vector<128xf32>
    %12 = vector.multi_reduction <add>, %11, %cst_7 [1] : vector<128x64xf32> to vector<128xf32>
    %13 = vector.shape_cast %12 : vector<128xf32> to vector<128x1xf32>
    %cst_8 = arith.constant 6.400000e+01 : f32
    %14 = vector.broadcast %cst_8 : f32 to vector<128x1xf32>
    %15 = arith.divf %13, %14 : vector<128x1xf32>
    %16 = vector.broadcast %15 : vector<128x1xf32> to vector<128x64xf32>
    %17 = arith.subf %11, %16 : vector<128x64xf32>
    %18 = arith.mulf %17, %17 : vector<128x64xf32>
    %cst_9 = arith.constant dense<0.000000e+00> : vector<128xf32>
    %19 = vector.multi_reduction <add>, %18, %cst_9 [1] : vector<128x64xf32> to vector<128xf32>
    %20 = vector.shape_cast %19 : vector<128xf32> to vector<128x1xf32>
    %cst_10 = arith.constant 6.400000e+01 : f32
    %21 = vector.broadcast %cst_10 : f32 to vector<128x1xf32>
    %22 = arith.divf %20, %21 : vector<128x1xf32>
    %cst_11 = arith.constant 9.99999974E-6 : f32
    %23 = vector.broadcast %cst_11 : f32 to vector<128x1xf32>
    %24 = arith.addf %22, %23 : vector<128x1xf32>
    %25 = math.rsqrt %24 : vector<128x1xf32>
    %26 = vector.broadcast %25 : vector<128x1xf32> to vector<128x64xf32>
    %27 = arith.mulf %17, %26 : vector<128x64xf32>
    %28 = arith.truncf %27 : vector<128x64xf32> to vector<128x64xbf16>
    %c0_12 = arith.constant 0 : index
    %c0_13 = arith.constant 0 : index
    %29 = vector.load %arg4[%c0_12, %c0_13] : memref<64x4xbf16, #tpu.memory_space<vmem>>, vector<64x4xbf16>
    %cst_14 = arith.constant dense<0.000000e+00> : vector<128x4xf32>
    %30 = tpu.matmul %28, %29, %cst_14 {dimension_numbers = #tpu.dot_dimension_numbers<[1], [0], [0], [1], [0, 0, 1, 1], [], []>} : vector<128x64xbf16>, vector<64x4xbf16>, vector<128x4xf32> -> vector<128x4xf32>
    %c0_15 = arith.constant 0 : index
    %c0_16 = arith.constant 0 : index
    %31 = vector.load %arg5[%c0_15, %c0_16] : memref<1x4xf32, #tpu.memory_space<vmem>>, vector<1x4xf32>
    %32 = vector.broadcast %31 : vector<1x4xf32> to vector<128x4xf32>
    %33 = arith.addf %30, %32 : vector<128x4xf32>
    %34 = tpu.transpose %33, [1, 0] : vector<128x4xf32> -> vector<4x128xf32>
    %cst_17 = arith.constant dense<0xFF800000> : vector<128xf32>
    %35 = vector.multi_reduction <maximumf>, %34, %cst_17 [0] : vector<4x128xf32> to vector<128xf32>
    %36 = vector.shape_cast %35 : vector<128xf32> to vector<1x128xf32>
    %37 = tpu.iota {dimensions = array<i32: 0>} : vector<4x128xi32>
    %38 = vector.broadcast %36 : vector<1x128xf32> to vector<4x128xf32>
    %39 = arith.cmpf oeq, %34, %38 : vector<4x128xf32>
    %c1073741824_i32 = arith.constant 1073741824 : i32
    %40 = vector.broadcast %c1073741824_i32 : i32 to vector<4x128xi32>
    %41 = arith.select %39, %37, %40 : vector<4x128xi1>, vector<4x128xi32>
    %cst_18 = arith.constant dense<2147483647> : vector<128xi32>
    %42 = vector.multi_reduction <minsi>, %41, %cst_18 [0] : vector<4x128xi32> to vector<128xi32>
    %43 = vector.shape_cast %42 : vector<128xi32> to vector<1x128xi32>
    %44 = arith.sitofp %43 : vector<1x128xi32> to vector<1x128xf32>
    %45 = tpu.concatenate %34, %36, %44 in 0 : vector<4x128xf32>, vector<1x128xf32>, vector<1x128xf32> -> vector<6x128xf32>
    %c0_19 = arith.constant 0 : index
    %c0_20 = arith.constant 0 : index
    %46 = vector.load %arg6[%c0_19, %c0_20] : memref<6x128xf32, #tpu.memory_space<vmem>>, vector<6x128xf32>
    tpu.vector_store %arg6[%c0_19, %c0_20], %45 {strides = array<i32>} : memref<6x128xf32, #tpu.memory_space<vmem>>, vector<6x128xf32>,
    return
  }
  func.func @transform_0(%arg0: i32) -> (i32, i32) {
    %c0_i32 = arith.constant 0 : i32
    %c0_i32_0 = arith.constant 0 : i32
    return %arg0, %c0_i32 : i32, i32
  }
  func.func @transform_1(%arg0: i32) -> (i32, i32) {
    %c0_i32 = arith.constant 0 : i32
    %c0_i32_0 = arith.constant 0 : i32
    %c0_i32_1 = arith.constant 0 : i32
    return %c0_i32, %c0_i32_0 : i32, i32
  }
  func.func @transform_2(%arg0: i32) -> (i32, i32) {
    %c0_i32 = arith.constant 0 : i32
    %c0_i32_0 = arith.constant 0 : i32
    %c0_i32_1 = arith.constant 0 : i32
    return %c0_i32, %c0_i32_0 : i32, i32
  }
  func.func @transform_3(%arg0: i32) -> (i32, i32) {
    %c0_i32 = arith.constant 0 : i32
    %c0_i32_0 = arith.constant 0 : i32
    %c0_i32_1 = arith.constant 0 : i32
    return %c0_i32, %c0_i32_0 : i32, i32
  }
  func.func @transform_4(%arg0: i32) -> (i32, i32) {
    %c0_i32 = arith.constant 0 : i32
    %c0_i32_0 = arith.constant 0 : i32
    %c0_i32_1 = arith.constant 0 : i32
    return %c0_i32, %c0_i32_0 : i32, i32
  }
  func.func @transform_5(%arg0: i32) -> (i32, i32) {
    %c0_i32 = arith.constant 0 : i32
    %c0_i32_0 = arith.constant 0 : i32
    return %c0_i32, %arg0 : i32, i32
  }
}

</mosaic_0001>

<llo_original>
// kernel: tpu_custom_call.1
$region0: #{tpu_custom_call.1}
  #allocation0 [shape = 'u32[]', space=smem, size = 0x4, offset = 0x4, fixed_abs, tag = 'smem constant byte address 0x4 - core index']
  #allocation1 [shape = 'u32[144,128]{1,0:T(1,128)}', space=vmem, size = 0x12000, scoped, tag = 'internal scratch']
  %s0 = inlined_call_operand.vmem [shape: f32[10,16], index: 0, kind: input, shape index: {}]
  %s1 = inlined_call_operand.vmem [shape: bf16[16,64], index: 1, kind: input, shape index: {}]
  %s2 = inlined_call_operand.vmem [shape: f32[1,64], index: 2, kind: input, shape index: {}]
  %s3 = inlined_call_operand.vmem [shape: bf16[64,4], index: 3, kind: input, shape index: {}]
  %s4 = inlined_call_operand.vmem [shape: f32[1,4], index: 4, kind: input, shape index: {}]
  %s5 = inlined_call_operand.hbm [shape: f32[6,10], index: 5, kind: output, shape index: {}]
  %s6 = sld [smem:[#allocation0]]
  $region30: #{tpu_custom_call.1} parent=0
    _
  %s8 = ssub.s32 1, %s6
  %s9 = scalar_select 0, %s8, %s6
  $region1: #{tpu_custom_call.1} parent=0
    #allocation2 [shape = 'u8[4096]{0}', space=vmem, size = 0x1000, scoped, tag = 'output window, operand 0, single buffered']
    #allocation3 [shape = 's32[1]{0}', space=sflag, size = 0x4, scoped, tag = 'scoped memory for tpu_custom_call.1']
    %10 = vsyncpa [#allocation3], 0
    // Predicated region
    $region2: #{tpu_custom_call.1} parent=1 // pred_check
      _
    $region3: #{tpu_custom_call.1} parent=1 // pred_check_branch
      %12 = sbr.rel (0) target = $region5
    $region4: #{tpu_custom_call.1} parent=1 // pred_region
      _
    $region5: #{tpu_custom_call.1} parent=1 // pred_fallthru
      _
    // Predicated region
    $region6: #{tpu_custom_call.1} parent=1 // pred_check
      _
    $region7: #{tpu_custom_call.1} parent=1 // pred_check_branch
      %14 = sbr.rel (0) target = $region9
    $region8: #{tpu_custom_call.1} parent=1 // pred_region
      _
    $region9: #{tpu_custom_call.1} parent=1 // pred_fallthru
      _
    // Predicated region
    $region10: #{tpu_custom_call.1} parent=1 // pred_check
      _
    $region11: #{tpu_custom_call.1} parent=1 // pred_check_branch
      %16 = sbr.rel (0) target = $region13
    $region12: #{tpu_custom_call.1} parent=1 // pred_region
      _
    $region13: #{tpu_custom_call.1} parent=1 // pred_fallthru
      _
    // Predicated region
    $region14: #{tpu_custom_call.1} parent=1 // pred_check
      _
    $region15: #{tpu_custom_call.1} parent=1 // pred_check_branch
      %18 = sbr.rel (0) target = $region17
    $region16: #{tpu_custom_call.1} parent=1 // pred_region
      _
    $region17: #{tpu_custom_call.1} parent=1 // pred_fallthru
      _
    // Predicated region
    $region18: #{tpu_custom_call.1} parent=1 // pred_check
      _
    $region19: #{tpu_custom_call.1} parent=1 // pred_check_branch
      %20 = sbr.rel (0) target = $region21
    $region20: #{tpu_custom_call.1} parent=1 // pred_region
      _
    $region21: #{tpu_custom_call.1} parent=1 // pred_fallthru
      _
    %v22 = vld [vmem:[%s0] sm:$0xff]
    %v23 = vld [vmem:[%s0 + $0x8] sm:$0xff]
    %v24 = vld [vmem:[%s0 + $0x10] sm:$0xff]
    %v25 = vld [vmem:[%s0 + $0x18] sm:$0xff]
    %v26 = vld [vmem:[%s0 + $0x20] sm:$0xff]
    %v27 = vld [vmem:[%s0 + $0x28] sm:$0xff]
    %v28 = vld [vmem:[%s0 + $0x30] sm:$0xff]
    %v29 = vld [vmem:[%s0 + $0x38] sm:$0xff]
    %v30 = vld [vmem:[%s0 + $0x40] sm:$0xff]
    %v31 = vld [vmem:[%s0 + $0x48] sm:$0xff]
    %v32 = vld [vmem:[%s0 + $0x50] sm:$0xff]
    %v33 = vld [vmem:[%s0 + $0x58] sm:$0xff]
    %v34 = vld [vmem:[%s0 + $0x60] sm:$0xff]
    %v35 = vld [vmem:[%s0 + $0x68] sm:$0xff]
    %v36 = vld [vmem:[%s0 + $0x70] sm:$0xff]
    %v37 = vld [vmem:[%s0 + $0x78] sm:$0xff]
    %v38 = vpack.c.bf16 %v23, %v22
    %v39 = vpack.c.bf16 %v25, %v24
    %v40 = vpack.c.bf16 %v27, %v26
    %v41 = vpack.c.bf16 %v29, %v28
    %v42 = vpack.c.bf16 %v31, %v30
    %v43 = vpack.c.bf16 %v33, %v32
    %v44 = vpack.c.bf16 %v35, %v34
    %v45 = vpack.c.bf16 %v37, %v36
    %v46 = vld [vmem:[%s1] sm:$0xf]
    %v47 = vld [vmem:[%s1 + $0x4] sm:$0xf]
    %v48 = vld [vmem:[%s2] sm:$0x1]
    %v50 = vlaneseq
    %v51 = vshrl.u32 %v50, 7
    %v52 = vsub.s32 0, %v51
    %v53 = vrot.slane %v48, %v52
    %v57 = vunpack.c.l.b16 %v46
    %v58 = vunpack.c.l.b16 %v47
    %v59 = vpack.c.b16 %v58, %v57
    %vm61 = vcmask 130048
    %v63 = vsel %vm61, %v38, 0
    %v66 = vsel %vm61, %v39, 0
    %v69 = vsel %vm61, %v40, 0
    %v72 = vsel %vm61, %v41, 0
    %v75 = vsel %vm61, %v42, 0
    %v78 = vsel %vm61, %v43, 0
    %v81 = vsel %vm61, %v44, 0
    %v84 = vsel %vm61, %v45, 0
    %86 = vmatprep.subr.bf16.mxu0 0
    %87 = vmatpush1.bf16.msra.mxu0 0
    %88 = vmatprep.subr.bf16.mxu0 0
    %89 = vmatpush1.bf16.msra.mxu0 0
    %90 = vmatprep.subr.bf16.mxu0 0
    %91 = vmatpush1.bf16.msra.mxu0 0
    %92 = vmatprep.subr.bf16.mxu0 0
    %93 = vmatpush1.bf16.msra.mxu0 0
    %94 = vmatprep.subr.bf16.mxu0 0
    %95 = vmatpush1.bf16.msra.mxu0 0
    %96 = vmatprep.subr.bf16.mxu0 0
    %97 = vmatpush1.bf16.msra.mxu0 0
    %98 = vmatprep.subr.bf16.mxu0 0
    %99 = vmatpush1.bf16.msra.mxu0 0
    %100 = vmatprep.subr.bf16.mxu0 0
    %101 = vmatpush1.bf16.msra.mxu0 %v59
    %102 = vmatprep.subr.bf16.mxu0 0
    %103 = vmatpush2.bf16.msra.mxu0 0
    %104 = vmatprep.subr.bf16.mxu0 0
    %105 = vmatpush2.bf16.msra.mxu0 0
    %106 = vmatprep.subr.bf16.mxu0 0
    %107 = vmatpush2.bf16.msra.mxu0 0
    %108 = vmatprep.subr.bf16.mxu0 0
    %109 = vmatpush2.bf16.msra.mxu0 0
    %110 = vmatprep.subr.bf16.mxu0 0
    %111 = vmatpush2.bf16.msra.mxu0 0
    %112 = vmatprep.subr.bf16.mxu0 0
    %113 = vmatpush2.bf16.msra.mxu0 0
    %114 = vmatprep.subr.bf16.mxu0 0
    %115 = vmatpush2.bf16.msra.mxu0 0
    %116 = vmatprep.subr.bf16.mxu0 0
    %117 = vmatpush2.bf16.msra.mxu0 0
    %118 = vmatprep.mubr.bf16.mxu0 0
    %119 = vmatmul.mubr.bf16.gmra.mxu0 %v63
    %v120 = vpop.f32.mrf.mxu0
    %v121 = vadd.f32 %v53, %v120
    %v122 = vpop.f32.mrf.mxu0
    %v123 = vpop.f32.mrf.mxu0
    %v124 = vadd.f32 %v53, %v123
    %v125 = vpop.f32.mrf.mxu0
    %126 = vmatprep.mubr.bf16.mxu0 0
    %127 = vmatmul.mubr.bf16.gmra.mxu0 %v66
    %v128 = vpop.f32.mrf.mxu0
    %v129 = vadd.f32 %v53, %v128
    %v130 = vpop.f32.mrf.mxu0
    %v131 = vpop.f32.mrf.mxu0
    %v132 = vadd.f32 %v53, %v131
    %v133 = vpop.f32.mrf.mxu0
    %134 = vmatprep.mubr.bf16.mxu0 0
    %135 = vmatmul.mubr.bf16.gmra.mxu0 %v69
    %v136 = vpop.f32.mrf.mxu0
    %v137 = vadd.f32 %v53, %v136
    %v138 = vpop.f32.mrf.mxu0
    %v139 = vpop.f32.mrf.mxu0
    %v140 = vadd.f32 %v53, %v139
    %v141 = vpop.f32.mrf.mxu0
    %142 = vmatprep.mubr.bf16.mxu0 0
    %143 = vmatmul.mubr.bf16.gmra.mxu0 %v72
    %v144 = vpop.f32.mrf.mxu0
    %v145 = vadd.f32 %v53, %v144
    %v146 = vpop.f32.mrf.mxu0
    %v147 = vpop.f32.mrf.mxu0
    %v148 = vadd.f32 %v53, %v147
    %v149 = vpop.f32.mrf.mxu0
    %150 = vmatprep.mubr.bf16.mxu0 0
    %151 = vmatmul.mubr.bf16.gmra.mxu0 %v75
    %v152 = vpop.f32.mrf.mxu0
    %v153 = vadd.f32 %v53, %v152
    %v154 = vpop.f32.mrf.mxu0
    %v155 = vpop.f32.mrf.mxu0
    %v156 = vadd.f32 %v53, %v155
    %v157 = vpop.f32.mrf.mxu0
    %158 = vmatprep.mubr.bf16.mxu0 0
    %159 = vmatmul.mubr.bf16.gmra.mxu0 %v78
    %v160 = vpop.f32.mrf.mxu0
    %v161 = vadd.f32 %v53, %v160
    %v162 = vpop.f32.mrf.mxu0
    %v163 = vpop.f32.mrf.mxu0
    %v164 = vadd.f32 %v53, %v163
    %v165 = vpop.f32.mrf.mxu0
    %166 = vmatprep.mubr.bf16.mxu0 0
    %167 = vmatmul.mubr.bf16.gmra.mxu0 %v81
    %v168 = vpop.f32.mrf.mxu0
    %v169 = vadd.f32 %v53, %v168
    %v170 = vpop.f32.mrf.mxu0
    %v171 = vpop.f32.mrf.mxu0
    %v172 = vadd.f32 %v53, %v171
    %v173 = vpop.f32.mrf.mxu0
    %174 = vmatprep.mubr.bf16.mxu0 0
    %175 = vmatmul.mubr.bf16.gmra.mxu0 %v84
    %v176 = vpop.f32.mrf.mxu0
    %v177 = vadd.f32 %v53, %v176
    %v178 = vpop.f32.mrf.mxu0
    %v179 = vpop.f32.mrf.mxu0
    %v180 = vadd.f32 %v53, %v179
    %v181 = vpop.f32.mrf.mxu0
    %182 = vdwg.mxu0
    %vm183 = vcmp.gt.f32.partialorder %v121, 0.0
    %vm184 = vcmp.gt.f32.partialorder %v124, 0.0
    %vm185 = vcmp.gt.f32.partialorder %v129, 0.0
    %vm186 = vcmp.gt.f32.partialorder %v132, 0.0
    %vm187 = vcmp.gt.f32.partialorder %v137, 0.0
    %vm188 = vcmp.gt.f32.partialorder %v140, 0.0
    %vm189 = vcmp.gt.f32.partialorder %v145, 0.0
    %vm190 = vcmp.gt.f32.partialorder %v148, 0.0
    %vm191 = vcmp.gt.f32.partialorder %v153, 0.0
    %vm192 = vcmp.gt.f32.partialorder %v156, 0.0
    %vm193 = vcmp.gt.f32.partialorder %v161, 0.0
    %vm194 = vcmp.gt.f32.partialorder %v164, 0.0
    %vm195 = vcmp.gt.f32.partialorder %v169, 0.0
    %vm196 = vcmp.gt.f32.partialorder %v172, 0.0
    %vm197 = vcmp.gt.f32.partialorder %v177, 0.0
    %vm198 = vcmp.gt.f32.partialorder %v180, 0.0
    %v199 = vmul.f32 %v121, 0.01
    %v200 = vmul.f32 %v124, 0.01
    %v201 = vmul.f32 %v129, 0.01
    %v202 = vmul.f32 %v132, 0.01
    %v203 = vmul.f32 %v137, 0.01
    %v204 = vmul.f32 %v140, 0.01
    %v205 = vmul.f32 %v145, 0.01
    %v206 = vmul.f32 %v148, 0.01
    %v207 = vmul.f32 %v153, 0.01
    %v208 = vmul.f32 %v156, 0.01
    %v209 = vmul.f32 %v161, 0.01
    %v210 = vmul.f32 %v164, 0.01
    %v211 = vmul.f32 %v169, 0.01
    %v212 = vmul.f32 %v172, 0.01
    %v213 = vmul.f32 %v177, 0.01
    %v214 = vmul.f32 %v180, 0.01
    %v215 = vsel %vm183, %v121, %v199
    %v216 = vsel %vm184, %v124, %v200
    %v217 = vsel %vm185, %v129, %v201
    %v218 = vsel %vm186, %v132, %v202
    %v219 = vsel %vm187, %v137, %v203
    %v220 = vsel %vm188, %v140, %v204
    %v221 = vsel %vm189, %v145, %v205
    %v222 = vsel %vm190, %v148, %v206
    %v223 = vsel %vm191, %v153, %v207
    %v224 = vsel %vm192, %v156, %v208
    %v225 = vsel %vm193, %v161, %v209
    %v226 = vsel %vm194, %v164, %v210
    %v227 = vsel %vm195, %v169, %v211
    %v228 = vsel %vm196, %v172, %v212
    %v229 = vsel %vm197, %v177, %v213
    %v230 = vsel %vm198, %v180, %v214
    %vm231 = vcmask 523264
    %v232 = vsel %vm231, %v215, 0.0
    %233 = vadd.xlane.f32.xlu0 %v232
    %v234 = vpop.xlane.xlu0 %233
    %v235 = vsel %vm231, %v216, 0.0
    %236 = vadd.xlane.f32.xlu0 %v235
    %v237 = vpop.xlane.xlu0 %236
    %v238 = vsel %vm231, %v217, 0.0
    %239 = vadd.xlane.f32.xlu0 %v238
    %v240 = vpop.xlane.xlu0 %239
    %v241 = vsel %vm231, %v218, 0.0
    %242 = vadd.xlane.f32.xlu0 %v241
    %v243 = vpop.xlane.xlu0 %242
    %v244 = vsel %vm231, %v219, 0.0
    %245 = vadd.xlane.f32.xlu0 %v244
    %v246 = vpop.xlane.xlu0 %245
    %v247 = vsel %vm231, %v220, 0.0
    %248 = vadd.xlane.f32.xlu0 %v247
    %v249 = vpop.xlane.xlu0 %248
    %v250 = vsel %vm231, %v221, 0.0
    %251 = vadd.xlane.f32.xlu0 %v250
    %v252 = vpop.xlane.xlu0 %251
    %v253 = vsel %vm231, %v222, 0.0
    %254 = vadd.xlane.f32.xlu0 %v253
    %v255 = vpop.xlane.xlu0 %254
    %v256 = vsel %vm231, %v223, 0.0
    %257 = vadd.xlane.f32.xlu0 %v256
    %v258 = vpop.xlane.xlu0 %257
    %v259 = vsel %vm231, %v224, 0.0
    %260 = vadd.xlane.f32.xlu0 %v259
    %v261 = vpop.xlane.xlu0 %260
    %v262 = vsel %vm231, %v225, 0.0
    %263 = vadd.xlane.f32.xlu0 %v262
    %v264 = vpop.xlane.xlu0 %263
    %v265 = vsel %vm231, %v226, 0.0
    %266 = vadd.xlane.f32.xlu0 %v265
    %v267 = vpop.xlane.xlu0 %266
    %v268 = vsel %vm231, %v227, 0.0
    %269 = vadd.xlane.f32.xlu0 %v268
    %v270 = vpop.xlane.xlu0 %269
    %v271 = vsel %vm231, %v228, 0.0
    %272 = vadd.xlane.f32.xlu0 %v271
    %v273 = vpop.xlane.xlu0 %272
    %v274 = vsel %vm231, %v229, 0.0
    %275 = vadd.xlane.f32.xlu0 %v274
    %v276 = vpop.xlane.xlu0 %275
    %v277 = vsel %vm231, %v230, 0.0
    %278 = vadd.xlane.f32.xlu0 %v277
    %v279 = vpop.xlane.xlu0 %278
    %v280 = vrcp.pop 64.0
    %v281 = vmul.f32 %v234, %v280
    %v282 = vmul.f32 %v237, %v280
    %v283 = vmul.f32 %v240, %v280
    %v284 = vmul.f32 %v243, %v280
    %v285 = vmul.f32 %v246, %v280
    %v286 = vmul.f32 %v249, %v280
    %v287 = vmul.f32 %v252, %v280
    %v288 = vmul.f32 %v255, %v280
    %v289 = vmul.f32 %v258, %v280
    %v290 = vmul.f32 %v261, %v280
    %v291 = vmul.f32 %v264, %v280
    %v292 = vmul.f32 %v267, %v280
    %v293 = vmul.f32 %v270, %v280
    %v294 = vmul.f32 %v273, %v280
    %v295 = vmul.f32 %v276, %v280
    %v296 = vmul.f32 %v279, %v280
    %v297 = vsub.f32 %v215, %v281
    %v298 = vsub.f32 %v216, %v282
    %v299 = vsub.f32 %v217, %v283
    %v300 = vsub.f32 %v218, %v284
    %v301 = vsub.f32 %v219, %v285
    %v302 = vsub.f32 %v220, %v286
    %v303 = vsub.f32 %v221, %v287
    %v304 = vsub.f32 %v222, %v288
    %v305 = vsub.f32 %v223, %v289
    %v306 = vsub.f32 %v224, %v290
    %v307 = vsub.f32 %v225, %v291
    %v308 = vsub.f32 %v226, %v292
    %v309 = vsub.f32 %v227, %v293
    %v310 = vsub.f32 %v228, %v294
    %v311 = vsub.f32 %v229, %v295
    %v312 = vsub.f32 %v230, %v296
    %v313 = vmul.f32 %v297, %v297
    %v314 = vmul.f32 %v298, %v298
    %v315 = vmul.f32 %v299, %v299
    %v316 = vmul.f32 %v300, %v300
    %v317 = vmul.f32 %v301, %v301
    %v318 = vmul.f32 %v302, %v302
    %v319 = vmul.f32 %v303, %v303
    %v320 = vmul.f32 %v304, %v304
    %v321 = vmul.f32 %v305, %v305
    %v322 = vmul.f32 %v306, %v306
    %v323 = vmul.f32 %v307, %v307
    %v324 = vmul.f32 %v308, %v308
    %v325 = vmul.f32 %v309, %v309
    %v326 = vmul.f32 %v310, %v310
    %v327 = vmul.f32 %v311, %v311
    %v328 = vmul.f32 %v312, %v312
    %v329 = vsel %vm231, %v313, 0.0
    %330 = vadd.xlane.f32.xlu0 %v329
    %v331 = vpop.xlane.xlu0 %330
    %v332 = vsel %vm231, %v314, 0.0
    %333 = vadd.xlane.f32.xlu0 %v332
    %v334 = vpop.xlane.xlu0 %333
    %v335 = vsel %vm231, %v315, 0.0
    %336 = vadd.xlane.f32.xlu0 %v335
    %v337 = vpop.xlane.xlu0 %336
    %v338 = vsel %vm231, %v316, 0.0
    %339 = vadd.xlane.f32.xlu0 %v338
    %v340 = vpop.xlane.xlu0 %339
    %v341 = vsel %vm231, %v317, 0.0
    %342 = vadd.xlane.f32.xlu0 %v341
    %v343 = vpop.xlane.xlu0 %342
    %v344 = vsel %vm231, %v318, 0.0
    %345 = vadd.xlane.f32.xlu0 %v344
    %v346 = vpop.xlane.xlu0 %345
    %v347 = vsel %vm231, %v319, 0.0
    %348 = vadd.xlane.f32.xlu0 %v347
    %v349 = vpop.xlane.xlu0 %348
    %v350 = vsel %vm231, %v320, 0.0
    %351 = vadd.xlane.f32.xlu0 %v350
    %v352 = vpop.xlane.xlu0 %351
    %v353 = vsel %vm231, %v321, 0.0
    %354 = vadd.xlane.f32.xlu0 %v353
    %v355 = vpop.xlane.xlu0 %354
    %v356 = vsel %vm231, %v322, 0.0
    %357 = vadd.xlane.f32.xlu0 %v356
    %v358 = vpop.xlane.xlu0 %357
    %v359 = vsel %vm231, %v323, 0.0
    %360 = vadd.xlane.f32.xlu0 %v359
    %v361 = vpop.xlane.xlu0 %360
    %v362 = vsel %vm231, %v324, 0.0
    %363 = vadd.xlane.f32.xlu0 %v362
    %v364 = vpop.xlane.xlu0 %363
    %v365 = vsel %vm231, %v325, 0.0
    %366 = vadd.xlane.f32.xlu0 %v365
    %v367 = vpop.xlane.xlu0 %366
    %v368 = vsel %vm231, %v326, 0.0
    %369 = vadd.xlane.f32.xlu0 %v368
    %v370 = vpop.xlane.xlu0 %369
    %v371 = vsel %vm231, %v327, 0.0
    %372 = vadd.xlane.f32.xlu0 %v371
    %v373 = vpop.xlane.xlu0 %372
    %v374 = vsel %vm231, %v328, 0.0
    %375 = vadd.xlane.f32.xlu0 %v374
    %v376 = vpop.xlane.xlu0 %375
    %v377 = vmul.f32 %v331, %v280
    %v378 = vmul.f32 %v334, %v280
    %v379 = vmul.f32 %v337, %v280
    %v380 = vmul.f32 %v340, %v280
    %v381 = vmul.f32 %v343, %v280
    %v382 = vmul.f32 %v346, %v280
    %v383 = vmul.f32 %v349, %v280
    %v384 = vmul.f32 %v352, %v280
    %v385 = vmul.f32 %v355, %v280
    %v386 = vmul.f32 %v358, %v280
    %v387 = vmul.f32 %v361, %v280
    %v388 = vmul.f32 %v364, %v280
    %v389 = vmul.f32 %v367, %v280
    %v390 = vmul.f32 %v370, %v280
    %v391 = vmul.f32 %v373, %v280
    %v392 = vmul.f32 %v376, %v280
    %v393 = vadd.f32 %v377, 1e-05
    %v394 = vadd.f32 %v378, 1e-05
    %v395 = vadd.f32 %v379, 1e-05
    %v396 = vadd.f32 %v380, 1e-05
    %v397 = vadd.f32 %v381, 1e-05
    %v398 = vadd.f32 %v382, 1e-05
    %v399 = vadd.f32 %v383, 1e-05
    %v400 = vadd.f32 %v384, 1e-05
    %v401 = vadd.f32 %v385, 1e-05
    %v402 = vadd.f32 %v386, 1e-05
    %v403 = vadd.f32 %v387, 1e-05
    %v404 = vadd.f32 %v388, 1e-05
    %v405 = vadd.f32 %v389, 1e-05
    %v406 = vadd.f32 %v390, 1e-05
    %v407 = vadd.f32 %v391, 1e-05
    %v408 = vadd.f32 %v392, 1e-05
    %v409 = vrsqrt.pop %v393
    %v410 = vrsqrt.pop %v394
    %v411 = vrsqrt.pop %v395
    %v412 = vrsqrt.pop %v396
    %v413 = vrsqrt.pop %v397
    %v414 = vrsqrt.pop %v398
    %v415 = vrsqrt.pop %v399
    %v416 = vrsqrt.pop %v400
    %v417 = vrsqrt.pop %v401
    %v418 = vrsqrt.pop %v402
    %v419 = vrsqrt.pop %v403
    %v420 = vrsqrt.pop %v404
    %v421 = vrsqrt.pop %v405
    %v422 = vrsqrt.pop %v406
    %v423 = vrsqrt.pop %v407
    %v424 = vrsqrt.pop %v408
    %v425 = vmul.f32 %v297, %v409
    %v426 = vmul.f32 %v298, %v410
    %v427 = vmul.f32 %v299, %v411
    %v428 = vmul.f32 %v300, %v412
    %v429 = vmul.f32 %v301, %v413
    %v430 = vmul.f32 %v302, %v414
    %v431 = vmul.f32 %v303, %v415
    %v432 = vmul.f32 %v304, %v416
    %v433 = vmul.f32 %v305, %v417
    %v434 = vmul.f32 %v306, %v418
    %v435 = vmul.f32 %v307, %v419
    %v436 = vmul.f32 %v308, %v420
    %v437 = vmul.f32 %v309, %v421
    %v438 = vmul.f32 %v310, %v422
    %v439 = vmul.f32 %v311, %v423
    %v440 = vmul.f32 %v312, %v424
    %v441 = vpack.c.bf16 %v426, %v425
    %v442 = vpack.c.bf16 %v428, %v427
    %v443 = vpack.c.bf16 %v430, %v429
    %v444 = vpack.c.bf16 %v432, %v431
    %v445 = vpack.c.bf16 %v434, %v433
    %v446 = vpack.c.bf16 %v436, %v435
    %v447 = vpack.c.bf16 %v438, %v437
    %v448 = vpack.c.bf16 %v440, %v439
    %v449 = vld [vmem:[%s3] sm:$0xf]
    %v450 = vld [vmem:[%s3 + $0x4] sm:$0xf]
    %v451 = vld [vmem:[%s3 + $0x8] sm:$0xf]
    %v452 = vld [vmem:[%s3 + $0xc] sm:$0xf]
    %v453 = vld [vmem:[%s3 + $0x10] sm:$0xf]
    %v454 = vld [vmem:[%s3 + $0x14] sm:$0xf]
    %v455 = vld [vmem:[%s3 + $0x18] sm:$0xf]
    %v456 = vld [vmem:[%s3 + $0x1c] sm:$0xf]
    %v457 = vld [vmem:[%s4] sm:$0x1]
    %v459 = vlaneseq
    %v460 = vshrl.u32 %v459, 7
    %v461 = vsub.s32 0, %v460
    %v462 = vrot.slane %v457, %v461
    %v472 = vunpack.c.l.b16 %v449
    %v473 = vunpack.c.l.b16 %v450
    %v474 = vunpack.c.l.b16 %v451
    %v475 = vunpack.c.l.b16 %v452
    %v476 = vunpack.c.l.b16 %v453
    %v477 = vunpack.c.l.b16 %v454
    %v478 = vunpack.c.l.b16 %v455
    %v479 = vunpack.c.l.b16 %v456
    %v480 = vpack.c.b16 %v473, %v472
    %v481 = vpack.c.b16 %v475, %v474
    %v482 = vpack.c.b16 %v477, %v476
    %v483 = vpack.c.b16 %v479, %v478
    %v489 = vsel %vm231, %v441, 0
    %v492 = vsel %vm231, %v442, 0
    %v495 = vsel %vm231, %v443, 0
    %v498 = vsel %vm231, %v444, 0
    %v501 = vsel %vm231, %v445, 0
    %v504 = vsel %vm231, %v446, 0
    %v507 = vsel %vm231, %v447, 0
    %v510 = vsel %vm231, %v448, 0
    %512 = vmatprep.subr.bf16.mxu0 0
    %513 = vmatpush1.bf16.msra.mxu0 0
    %514 = vmatprep.subr.bf16.mxu0 0
    %515 = vmatpush1.bf16.msra.mxu0 0
    %516 = vmatprep.subr.bf16.mxu0 0
    %517 = vmatpush1.bf16.msra.mxu0 0
    %518 = vmatprep.subr.bf16.mxu0 0
    %519 = vmatpush1.bf16.msra.mxu0 0
    %520 = vmatprep.subr.bf16.mxu0 0
    %521 = vmatpush1.bf16.msra.mxu0 %v483
    %522 = vmatprep.subr.bf16.mxu0 0
    %523 = vmatpush1.bf16.msra.mxu0 %v482
    %524 = vmatprep.subr.bf16.mxu0 0
    %525 = vmatpush1.bf16.msra.mxu0 %v481
    %526 = vmatprep.subr.bf16.mxu0 0
    %527 = vmatpush1.bf16.msra.mxu0 %v480
    %528 = vmatprep.subr.bf16.mxu0 0
    %529 = vmatpush2.bf16.msra.mxu0 0
    %530 = vmatprep.subr.bf16.mxu0 0
    %531 = vmatpush2.bf16.msra.mxu0 0
    %532 = vmatprep.subr.bf16.mxu0 0
    %533 = vmatpush2.bf16.msra.mxu0 0
    %534 = vmatprep.subr.bf16.mxu0 0
    %535 = vmatpush2.bf16.msra.mxu0 0
    %536 = vmatprep.subr.bf16.mxu0 0
    %537 = vmatpush2.bf16.msra.mxu0 0
    %538 = vmatprep.subr.bf16.mxu0 0
    %539 = vmatpush2.bf16.msra.mxu0 0
    %540 = vmatprep.subr.bf16.mxu0 0
    %541 = vmatpush2.bf16.msra.mxu0 0
    %542 = vmatprep.subr.bf16.mxu0 0
    %543 = vmatpush2.bf16.msra.mxu0 0
    %544 = vmatprep.mubr.bf16.mxu0 0
    %545 = vmatmul.mubr.bf16.gmra.mxu0 %v489
    %v546 = vpop.f32.mrf.mxu0
    %v547 = vadd.f32 %v462, %v546
    %v548 = vpop.f32.mrf.mxu0
    %v549 = vpop.f32.mrf.mxu0
    %v550 = vadd.f32 %v462, %v549
    %v551 = vpop.f32.mrf.mxu0
    %552 = vmatprep.mubr.bf16.mxu0 0
    %553 = vmatmul.mubr.bf16.gmra.mxu0 %v492
    %v554 = vpop.f32.mrf.mxu0
    %v555 = vadd.f32 %v462, %v554
    %v556 = vpop.f32.mrf.mxu0
    %v557 = vpop.f32.mrf.mxu0
    %v558 = vadd.f32 %v462, %v557
    %v559 = vpop.f32.mrf.mxu0
    %560 = vmatprep.mubr.bf16.mxu0 0
    %561 = vmatmul.mubr.bf16.gmra.mxu0 %v495
    %v562 = vpop.f32.mrf.mxu0
    %v563 = vadd.f32 %v462, %v562
    %v564 = vpop.f32.mrf.mxu0
    %v565 = vpop.f32.mrf.mxu0
    %v566 = vadd.f32 %v462, %v565
    %v567 = vpop.f32.mrf.mxu0
    %568 = vmatprep.mubr.bf16.mxu0 0
    %569 = vmatmul.mubr.bf16.gmra.mxu0 %v498
    %v570 = vpop.f32.mrf.mxu0
    %v571 = vadd.f32 %v462, %v570
    %v572 = vpop.f32.mrf.mxu0
    %v573 = vpop.f32.mrf.mxu0
    %v574 = vadd.f32 %v462, %v573
    %v575 = vpop.f32.mrf.mxu0
    %576 = vmatprep.mubr.bf16.mxu0 0
    %577 = vmatmul.mubr.bf16.gmra.mxu0 %v501
    %v578 = vpop.f32.mrf.mxu0
    %v579 = vadd.f32 %v462, %v578
    %v580 = vpop.f32.mrf.mxu0
    %v581 = vpop.f32.mrf.mxu0
    %v582 = vadd.f32 %v462, %v581
    %v583 = vpop.f32.mrf.mxu0
    %584 = vmatprep.mubr.bf16.mxu0 0
    %585 = vmatmul.mubr.bf16.gmra.mxu0 %v504
    %v586 = vpop.f32.mrf.mxu0
    %v587 = vadd.f32 %v462, %v586
    %v588 = vpop.f32.mrf.mxu0
    %v589 = vpop.f32.mrf.mxu0
    %v590 = vadd.f32 %v462, %v589
    %v591 = vpop.f32.mrf.mxu0
    %592 = vmatprep.mubr.bf16.mxu0 0
    %593 = vmatmul.mubr.bf16.gmra.mxu0 %v507
    %v594 = vpop.f32.mrf.mxu0
    %v595 = vadd.f32 %v462, %v594
    %v596 = vpop.f32.mrf.mxu0
    %v597 = vpop.f32.mrf.mxu0
    %v598 = vadd.f32 %v462, %v597
    %v599 = vpop.f32.mrf.mxu0
    %600 = vmatprep.mubr.bf16.mxu0 0
    %601 = vmatmul.mubr.bf16.gmra.mxu0 %v510
    %v602 = vpop.f32.mrf.mxu0
    %v603 = vadd.f32 %v462, %v602
    %v604 = vpop.f32.mrf.mxu0
    %v605 = vpop.f32.mrf.mxu0
    %v606 = vadd.f32 %v462, %v605
    %v607 = vpop.f32.mrf.mxu0
    %608 = vdwg.mxu0
    %609 = vxpose.xlu0.b32.start [1/16] %v547, 128
    %610 = vxpose.xlu0.b32.cont [2/16] %v550, 128
    %611 = vxpose.xlu0.b32.cont [3/16] %v555, 128
    %612 = vxpose.xlu0.b32.cont [4/16] %v558, 128
    %613 = vxpose.xlu0.b32.cont [5/16] %v563, 128
    %614 = vxpose.xlu0.b32.cont [6/16] %v566, 128
    %615 = vxpose.xlu0.b32.cont [7/16] %v571, 128
    %616 = vxpose.xlu0.b32.cont [8/16] %v574, 128
    %617 = vxpose.xlu0.b32.cont [9/16] %v579, 128
    %618 = vxpose.xlu0.b32.cont [10/16] %v582, 128
    %619 = vxpose.xlu0.b32.cont [11/16] %v587, 128
    %620 = vxpose.xlu0.b32.cont [12/16] %v590, 128
    %621 = vxpose.xlu0.b32.cont [13/16] %v595, 128
    %622 = vxpose.xlu0.b32.cont [14/16] %v598, 128
    %623 = vxpose.xlu0.b32.cont [15/16] %v603, 128
    %624 = vxpose.xlu0.b32.end [16/16] %v606, 128
    %v625 = vpop.trf.xlu0
    %v626 = vpop.trf.xlu0
    %v627 = vpop.trf.xlu0
    %v628 = vpop.trf.xlu0
    %v629 = vpop.trf.xlu0
    %v630 = vpop.trf.xlu0
    %v631 = vpop.trf.xlu0
    %v632 = vpop.trf.xlu0
    %v633 = vpop.trf.xlu0
    %v634 = vpop.trf.xlu0
    %v635 = vpop.trf.xlu0
    %v636 = vpop.trf.xlu0
    %v637 = vpop.trf.xlu0
    %v638 = vpop.trf.xlu0
    %v639 = vpop.trf.xlu0
    %v640 = vpop.trf.xlu0
    %vm641 = vcmask 1043456
    %v642 = vsel %vm641, %v625, -inf
    %v643 = vrot.slane %v642, 4
    %v644 = vmax.f32 %v642, %v643
    %v645 = vrot.slane %v644, 2
    %v646 = vmax.f32 %v644, %v645
    %v647 = vrot.slane %v646, 1
    %v648 = vmax.f32 %v646, %v647
    %v649 = vlaneseq
    %v650 = vshrl.u32 %v649, 7
    %vm651 = vcmp.eq.f32.partialorder %v625, %v648
    %v652 = vsel %vm651, %v650, 1073741824
    %v653 = vsel %vm641, %v652, 2147483647
    %v654 = vrot.slane %v653, 4
    %vm655 = vcmp.lt.s32.totalorder %v653, %v654
    %v656 = vsel %vm655, %v653, %v654
    %v657 = vrot.slane %v656, 2
    %vm658 = vcmp.lt.s32.totalorder %v656, %v657
    %v659 = vsel %vm658, %v656, %v657
    %v660 = vrot.slane %v659, 1
    %vm661 = vcmp.lt.s32.totalorder %v659, %v660
    %v662 = vsel %vm661, %v659, %v660
    %v663 = vcvt.s32.f32 %v662
    %v664 = vsel %vm641, %v625, %v648
    %vm665 = vcmask 1044480
    %v666 = vsel %vm665, %v664, %v663
    %667 = vst [vmem:[#allocation2] sm:$0x3f] %v666
    // Predicated region
    $region22: #{tpu_custom_call.1} parent=1 // pred_check
      _
    $region23: #{tpu_custom_call.1} parent=1 // pred_check_branch
      %669 = sbr.rel (0) target = $region25
    $region24: #{tpu_custom_call.1} parent=1 // pred_region
      %s671 = ssub.s32 128, 128
      %672 = vsyncadd [#allocation3], %s671
      %s674 = sshll.u32 [#allocation2], 4
      %s675 = int_to_ptr.vmem [resolvable:$true] %s674
      %677 = dma.vmem_to_hbm [thread:$0]  %s675, 128, %s5, [#allocation3]
    $region25: #{tpu_custom_call.1} parent=1 // pred_fallthru
      _
    // Predicated region
    $region26: #{tpu_custom_call.1} parent=1 // pred_check
      _
    $region27: #{tpu_custom_call.1} parent=1 // pred_check_branch
      %679 = sbr.rel (0) target = $region29
    $region28: #{tpu_custom_call.1} parent=1 // pred_region
      %680 = dma.done [#allocation3], 128
    $region29: #{tpu_custom_call.1} parent=1 // pred_fallthru
      _
    %681 = vsyncpa [#allocation3], 1

</llo_original>
